<compile_context>
chip_gen: v5e
topology: v5e:2x2
jax: 0.10.0
libtpu: 0.0.40
codegen_flags: <defaults>
</compile_context>

<pallas_src>
import functools

import jax
import jax.numpy as jnp
from jax.experimental import pallas as pl
from jax.experimental.pallas import tpu as pltpu

_LANE = 128
# Compiler scoped-VMEM limit and the tiling budget derived from it (in+out,
# double-buffered => 4 big buffers). 24 MiB is below every generation's
# physical VMEM (v7x: 64 MiB) and leaves Mosaic ~8 MiB of internal scratch.
_VMEM_LIMIT_BYTES = 24 * 1024 * 1024
_TILE_VMEM_BUDGET = 16 * 1024 * 1024


def _sublane(itemsize):
    return {4: 8, 2: 16, 1: 32}.get(itemsize, 8)


def _round_up(v, m):
    return ((v + m - 1) // m) * m


def _int_pow(x, p):
    """x**p for small positive integer p via explicit multiplies (no exp/log)."""
    acc = x
    for _ in range(p - 1):
        acc = acc * x
    return acc


def _pow_sum(xf, power):
    """sum(x**p) along the lane axis, keepdims, in f32."""
    if power == 2:
        return jnp.sum(xf * xf, axis=-1, keepdims=True)
    if isinstance(power, int) and power > 0:
        return jnp.sum(_int_pow(xf, power), axis=-1, keepdims=True)
    # Generic float exponent: matches torch.pow semantics (NaN for negative
    # base). This path is EUP-bound (2 transcendentals/elem) — avoid on v7x.
    return jnp.sum(jnp.power(xf, power), axis=-1, keepdims=True)


def _inv_from_sum(s, power):
    """1 / s**(1/p), computed on the EUP (rsqrt / pow with folded sign)."""
    if power == 2:
        return jax.lax.rsqrt(s)
    # Fold the reciprocal into the exponent: one EUP pow, no VPU divide.
    return jnp.power(s, -1.0 / power)


def _scale_and_store(x, inv, o_ref):
    # bf16 store-side multiply (v6e/v7x bf16 VALU); f32 otherwise.
    if x.dtype == jnp.bfloat16:
        o_ref[...] = (x * inv.astype(x.dtype)).astype(o_ref.dtype)
    else:
        o_ref[...] = (x.astype(jnp.float32) * inv).astype(o_ref.dtype)


# ----------------------------------------------------------------------------
# Single-pass kernel: one (tile_rows, C) block holds full rows.
# ----------------------------------------------------------------------------
def _normalize_kernel(x_ref, o_ref, *, power):
    x = x_ref[...]
    xf = x.astype(jnp.float32)
    s = _pow_sum(xf, power)            # (TM, 1)
    inv = _inv_from_sum(s, power)      # (TM, 1)
    _scale_and_store(x, inv, o_ref)


# ----------------------------------------------------------------------------
# Wide-C fallback: pass 1 reduces the p-sum across C tiles, pass 2 scales.
# ----------------------------------------------------------------------------
def _inv_norm_kernel(x_ref, inv_ref, acc_ref, *, power):
    c = pl.program_id(1)

    @pl.when(c == 0)
    def _():
        acc_ref[...] = jnp.zeros_like(acc_ref)

    xf = x_ref[...].astype(jnp.float32)
    acc_ref[...] += _pow_sum(xf, power)

    @pl.when(c == pl.num_programs(1) - 1)
    def _():
        inv_ref[...] = _inv_from_sum(acc_ref[...], power)


def _scale_kernel(x_ref, inv_ref, o_ref):
    _scale_and_store(x_ref[...], inv_ref[...], o_ref)


# ----------------------------------------------------------------------------
# Tiling heuristics
# ----------------------------------------------------------------------------
def _pick_tile_rows(n_rows, n_cols, itemsize):
    sublane = _sublane(itemsize)
    per_buffer = max(1, _TILE_VMEM_BUDGET // 4)       # in + out, double-buffered
    max_rows_vmem = max(sublane, per_buffer // max(1, n_cols * itemsize))
    # Cap tiles so mid/large N gets ~8 grid steps: HBM roofline already
    # plateaus at 512-row tiles, and more steps => pipeline overlap.
    cap = max(512, pl.cdiv(n_rows, 8))
    tile = min(max(n_rows, 1), max_rows_vmem, cap)
    tile = max(sublane, (tile // sublane) * sublane)

    # Prefer an EVEN step count >= 4: v7x shards the parallel axis across
    # 2 TensorCores, so even steps avoid TC imbalance and >=4 gives each TC
    # >=2 steps to pipeline. Pure layout search over sublane multiples.
    if n_rows > 4 * sublane:
        pick_even = None
        pick_any = None
        t = tile
        while t >= sublane:
            s = pl.cdiv(n_rows, t)
            if s >= 4:
                if pick_any is None:
                    pick_any = t
                if s % 2 == 0:
                    pick_even = t
                    break
            t -= sublane
        if pick_even is not None:
            tile = pick_even
        elif pick_any is not None:
            tile = pick_any
    return tile


def _normalize_c_split(x_in, power, itemsize, c_block, tile_rows):
    """Two fused streaming passes when full rows don't fit in VMEM."""
    N, c_pad = x_in.shape
    sublane = _sublane(itemsize)

    if tile_rows is None:
        per_buffer = _TILE_VMEM_BUDGET // 4
        tm = per_buffer // max(1, c_block * itemsize)
        tm = max(sublane, min((tm // sublane) * sublane, 512))
    else:
        tm = max(sublane, (tile_rows // sublane) * sublane)
    tm = min(tm, _round_up(N, sublane))

    n_r = pl.cdiv(N, tm)
    n_c = c_pad // c_block            # exact by construction (C padded to n_c*c_block)

    cp = pltpu.CompilerParams(
        dimension_semantics=("parallel", "arbitrary"),
        vmem_limit_bytes=_VMEM_LIMIT_BYTES,
    )
    inv = pl.pallas_call(
        functools.partial(_inv_norm_kernel, power=power),
        out_shape=jax.ShapeDtypeStruct((N, 1), jnp.float32),
        grid_spec=pltpu.PrefetchScalarGridSpec(
            num_scalar_prefetch=0,
            grid=(n_r, n_c),
            in_specs=[pl.BlockSpec((tm, c_block), lambda i, c: (i, c))],
            out_specs=pl.BlockSpec((tm, 1), lambda i, c: (i, 0)),
            scratch_shapes=[pltpu.VMEM((tm, 1), jnp.float32)],
        ),
        compiler_params=cp,
    )(x_in)

    cp2 = pltpu.CompilerParams(
        dimension_semantics=("parallel", "parallel"),
        vmem_limit_bytes=_VMEM_LIMIT_BYTES,
    )
    out = pl.pallas_call(
        _scale_kernel,
        out_shape=jax.ShapeDtypeStruct((N, c_pad), x_in.dtype),
        grid_spec=pltpu.PrefetchScalarGridSpec(
            num_scalar_prefetch=0,
            grid=(n_r, n_c),
            in_specs=[pl.BlockSpec((tm, c_block), lambda i, c: (i, c)),
                      pl.BlockSpec((tm, 1), lambda i, c: (i, 0))],
            out_specs=pl.BlockSpec((tm, c_block), lambda i, c: (i, c)),
        ),
        compiler_params=cp2,
    )(x_in, inv)
    return out


# ----------------------------------------------------------------------------
# Public wrapper
# ----------------------------------------------------------------------------
def normalize(x, power=2, *, tile_rows=None, c_block=None):
    """L-p normalize along the feature axis (last axis of the (N, C) layout)."""
    N, C = x.shape
    itemsize = jnp.dtype(x.dtype).itemsize
    sublane = _sublane(itemsize)

    # Lane-dense guard: pad C to a multiple of 128 (zeros contribute 0 to the
    # p-sum for p > 0), so the output store is never a masked partial store.
    c_pad = _round_up(C, _LANE)

    # Wide-C fallback decision: even a minimum row tile (x4 buffers) must fit.
    forced_split = c_block is not None and _round_up(c_block, _LANE) < c_pad
    need_split = forced_split or (4 * sublane * c_pad * itemsize > _TILE_VMEM_BUDGET)

    if need_split:
        if c_block is None:
            per_buffer = _TILE_VMEM_BUDGET // 4
            c_block_max = max(
                _LANE, (per_buffer // max(1, 8 * sublane * itemsize)) // _LANE * _LANE)
        else:
            c_block_max = max(_LANE, _round_up(min(c_block, c_pad), _LANE))
        n_c = pl.cdiv(c_pad, c_block_max)
        c_blk = _round_up(pl.cdiv(c_pad, n_c), _LANE)
        c_pad = n_c * c_blk               # C tiles are exact; extra cols are zero

    x_in = x if c_pad == C else jnp.pad(x, ((0, 0), (0, c_pad - C)))

    if need_split:
        out = _normalize_c_split(x_in, power, itemsize, c_blk, tile_rows)
    else:
        tm = tile_rows if tile_rows is not None else _pick_tile_rows(N, c_pad, itemsize)
        tm = max(sublane, (tm // sublane) * sublane)
        grid = (pl.cdiv(N, tm),)
        out = pl.pallas_call(
            functools.partial(_normalize_kernel, power=power),
            out_shape=jax.ShapeDtypeStruct((N, c_pad), x.dtype),
            grid_spec=pltpu.PrefetchScalarGridSpec(
                num_scalar_prefetch=0,
                grid=grid,
                in_specs=[pl.BlockSpec((tm, c_pad), lambda i: (i, 0))],
                out_specs=pl.BlockSpec((tm, c_pad), lambda i: (i, 0)),
            ),
            compiler_params=pltpu.CompilerParams(
                dimension_semantics=("parallel",),
                vmem_limit_bytes=_VMEM_LIMIT_BYTES,
            ),
        )(x_in)

    return out if c_pad == C else out[:, :C]


if __name__ == "__main__":
    key = jax.random.PRNGKey(0)

    def ref_norm(x, p):
        return x / jnp.power(jnp.sum(jnp.power(x, p), axis=1, keepdims=True), 1.0 / p)

    # 1) Contrastive-learning projection-head output: 16 x 128, p=2.
    N, C = 16, 128
    x = jax.random.normal(key, (N, C), dtype=jnp.float32)
    out = jax.block_until_ready(normalize(x, power=2))
    assert out.shape == x.shape and out.dtype == x.dtype
    assert jnp.allclose(out, ref_norm(x, 2), atol=1e-5, rtol=1e-5)

    # 2) Non-128-aligned C exercises the lane-dense padding path.
    x2 = jax.random.normal(jax.random.PRNGKey(1), (16, 96), dtype=jnp.float32)
    out2 = jax.block_until_ready(normalize(x2, power=2))
    assert out2.shape == x2.shape
    assert jnp.allclose(out2, ref_norm(x2, 2), atol=1e-5, rtol=1e-5)

    # 3) Integer power != 2 path.
    x3 = jnp.abs(x)
    out3 = jax.block_until_ready(normalize(x3, power=3))
    assert jnp.allclose(out3, ref_norm(x3, 3), atol=1e-5, rtol=1e-5)

    # 4) Wide-C fallback (forced split for test coverage at small shapes).
    x4 = jax.random.normal(jax.random.PRNGKey(2), (16, 256), dtype=jnp.float32)
    out4 = jax.block_until_ready(normalize(x4, power=2, c_block=128))
    assert jnp.allclose(out4, ref_norm(x4, 2), atol=1e-5, rtol=1e-5)

    print("KERNEL_OK")
</pallas_src>

<mosaic_0001>
module attributes {stable_mosaic.version = 11 : i64} {
  func.func @_normalize_kernel(%arg0: i32, %arg1: memref<16x128xf32, #tpu.memory_space<vmem>>, %arg2: memref<16x128xf32, #tpu.memory_space<vmem>>) attributes {dimension_semantics = [#tpu.dimension_semantics<parallel>], iteration_bounds = array<i64: 1>, scalar_prefetch = 0 : i64, scratch_operands = 0 : i64, tpu.core_type = #tpu.core_type<tc>, window_params = [{transform_indices = @transform_0, window_bounds = array<i64: 16, 128>}, {transform_indices = @transform_1, window_bounds = array<i64: 16, 128>}]} {
    %c0 = arith.constant 0 : index
    %c0_0 = arith.constant 0 : index
    %0 = vector.load %arg1[%c0, %c0_0] : memref<16x128xf32, #tpu.memory_space<vmem>>, vector<16x128xf32>
    %1 = arith.mulf %0, %0 : vector<16x128xf32>
    %cst = arith.constant dense<0.000000e+00> : vector<16xf32>
    %2 = vector.multi_reduction <add>, %1, %cst [1] : vector<16x128xf32> to vector<16xf32>
    %3 = vector.shape_cast %2 : vector<16xf32> to vector<16x1xf32>
    %4 = math.rsqrt %3 : vector<16x1xf32>
    %5 = vector.broadcast %4 : vector<16x1xf32> to vector<16x128xf32>
    %6 = arith.mulf %0, %5 : vector<16x128xf32>
    %c0_1 = arith.constant 0 : index
    %c0_2 = arith.constant 0 : index
    %7 = vector.load %arg2[%c0_1, %c0_2] : memref<16x128xf32, #tpu.memory_space<vmem>>, vector<16x128xf32>
    tpu.vector_store %arg2[%c0_1, %c0_2], %6 {strides = array<i32>} : memref<16x128xf32, #tpu.memory_space<vmem>>, vector<16x128xf32>,
    return
  }
  func.func @transform_0(%arg0: i32) -> (i32, i32) {
    %c0_i32 = arith.constant 0 : i32
    %c0_i32_0 = arith.constant 0 : i32
    return %arg0, %c0_i32 : i32, i32
  }
  func.func @transform_1(%arg0: i32) -> (i32, i32) {
    %c0_i32 = arith.constant 0 : i32
    %c0_i32_0 = arith.constant 0 : i32
    return %arg0, %c0_i32 : i32, i32
  }
}

</mosaic_0001>

<llo_original>
// kernel: tpu_custom_call.1
$region0: #{tpu_custom_call.1}
  #allocation0 [shape = 'u32[]', space=smem, size = 0x4, offset = 0x4, fixed_abs, tag = 'smem constant byte address 0x4 - core index']
  #allocation1 [shape = 'u32[72,128]{1,0:T(1,128)}', space=vmem, size = 0x9000, scoped, tag = 'internal scratch']
  %s0 = inlined_call_operand.hbm [shape: f32[16,128], index: 0, kind: input, shape index: {}]
  %s1 = inlined_call_operand.hbm [shape: f32[16,128], index: 1, kind: output, shape index: {}]
  %s2 = sld [smem:[#allocation0]]
  $region18: #{tpu_custom_call.1} parent=0
    _
  %s4 = ssub.s32 1, %s2
  %s5 = scalar_select 0, %s4, %s2
  $region1: #{tpu_custom_call.1} parent=0
    #allocation2 [shape = 'u8[8192]{0}', space=vmem, size = 0x2000, scoped, tag = 'input window, operand 0, single buffered']
    #allocation3 [shape = 's32[1]{0}', space=sflag, size = 0x4, scoped, tag = 'scoped memory for tpu_custom_call.1']
    #allocation4 [shape = 's32[1]{0}', space=sflag, size = 0x4, scoped, tag = 'scoped memory for tpu_custom_call.1']
    #allocation5 [shape = 'u8[8192]{0}', space=vmem, size = 0x2000, scoped, tag = 'output window, operand 0, single buffered']
    %6 = vsyncpa [#allocation3], 0
    %7 = vsyncpa [#allocation4], 0
    // Predicated region
    $region2: #{tpu_custom_call.1} parent=1 // pred_check
      _
    $region3: #{tpu_custom_call.1} parent=1 // pred_check_branch
      %9 = sbr.rel (0) target = $region5
    $region4: #{tpu_custom_call.1} parent=1 // pred_region
      %11 = vsyncadd [#allocation3], 0
      %s12 = sshll.u32 %s0, 4
      %s13 = int_to_ptr.hbm [resolvable:$true] %s12
      %s14 = sshll.u32 [#allocation2], 4
      %s15 = int_to_ptr.vmem [resolvable:$true] %s14
      %20 = dma.hbm_to_vmem [thread:$0]  %s13, 256, %s15, [#allocation3], 128, 128, 8
    $region5: #{tpu_custom_call.1} parent=1 // pred_fallthru
      _
    // Predicated region
    $region6: #{tpu_custom_call.1} parent=1 // pred_check
      _
    $region7: #{tpu_custom_call.1} parent=1 // pred_check_branch
      %22 = sbr.rel (0) target = $region9
    $region8: #{tpu_custom_call.1} parent=1 // pred_region
      %24 = dma.done [#allocation3], 256
    $region9: #{tpu_custom_call.1} parent=1 // pred_fallthru
      _
    %v25 = vld [vmem:[#allocation2] sm:$0xff]
    %v26 = vld [vmem:[#allocation2 + $0x8] sm:$0xff]
    %v27 = vmul.f32 %v25, %v25
    %v28 = vmul.f32 %v26, %v26
    %29 = vadd.xlane.f32.xlu0 %v27
    %v30 = vpop.xlane.xlu0 %29
    %31 = vadd.xlane.f32.xlu0 %v28
    %v32 = vpop.xlane.xlu0 %31
    %v33 = vrsqrt.pop %v30
    %v34 = vmul.f32 %v33, %v30
    %v35 = vmul.f32 %v34, %v33
    %v36 = vmul.f32 0.5, %v35
    %v37 = vsub.f32 1.5, %v36
    %v38 = vmul.f32 %v33, %v37
    %vm39 = vweird.f32 %v30
    %vm40 = vweird.f32 %v33
    %vm41 = vmor %vm39, %vm40
    %v42 = vsel %vm41, %v33, %v38
    %v43 = vrsqrt.pop %v32
    %v44 = vmul.f32 %v43, %v32
    %v45 = vmul.f32 %v44, %v43
    %v46 = vmul.f32 0.5, %v45
    %v47 = vsub.f32 1.5, %v46
    %v48 = vmul.f32 %v43, %v47
    %vm49 = vweird.f32 %v32
    %vm50 = vweird.f32 %v43
    %vm51 = vmor %vm49, %vm50
    %v52 = vsel %vm51, %v43, %v48
    %v53 = vmul.f32 %v25, %v42
    %v54 = vmul.f32 %v26, %v52
    %55 = vst [vmem:[#allocation5] sm:$0xff] %v53
    %56 = vst [vmem:[#allocation5 + $0x8] sm:$0xff] %v54
    // Predicated region
    $region10: #{tpu_custom_call.1} parent=1 // pred_check
      _
    $region11: #{tpu_custom_call.1} parent=1 // pred_check_branch
      %58 = sbr.rel (0) target = $region13
    $region12: #{tpu_custom_call.1} parent=1 // pred_region
      %60 = vsyncadd [#allocation4], 0
      %s61 = sshll.u32 [#allocation5], 4
      %s62 = int_to_ptr.vmem [resolvable:$true] %s61
      %s63 = sshll.u32 %s1, 4
      %s64 = int_to_ptr.hbm [resolvable:$true] %s63
      %69 = dma.vmem_to_hbm [thread:$0]  %s62, 256, %s64, [#allocation4], 128, 128, 8
    $region13: #{tpu_custom_call.1} parent=1 // pred_fallthru
      _
    // Predicated region
    $region14: #{tpu_custom_call.1} parent=1 // pred_check
      _
    $region15: #{tpu_custom_call.1} parent=1 // pred_check_branch
      %71 = sbr.rel (0) target = $region17
    $region16: #{tpu_custom_call.1} parent=1 // pred_region
      %73 = dma.done [#allocation4], 256
    $region17: #{tpu_custom_call.1} parent=1 // pred_fallthru
      _
    %74 = vsyncpa [#allocation3], 1
    %75 = vsyncpa [#allocation4], 1

</llo_original>
